<compile_context>
chip_gen: v7x
topology: tpu7x:2x2x1
jax: 0.10.0
libtpu: 0.0.40
codegen_flags: <defaults>
</compile_context>

<pallas_src>
import functools

import jax
import jax.numpy as jnp
import numpy as np
from jax.experimental import pallas as pl
from jax.experimental.pallas import tpu as pltpu

GAMMA = 2.0  # module default
EPS = 1e-6


def _round_up(x, m):
    return ((x + m - 1) // m) * m


def _focal_loss_kernel(logits_ref, labels_ref, weight_ref, out_ref, *, gamma):
    # Block shapes: logits/labels (Bt, L, St), weight (1, L, 1), out (Bt, St).
    y = logits_ref[...].astype(jnp.float32)
    t = labels_ref[...].astype(jnp.float32)
    w = weight_ref[...].astype(jnp.float32)            # (1, L, 1) broadcast

    ce = -jnp.log(y + EPS) * t                         # 1 EUP transcendental / elem
    om = 1.0 - y
    if gamma == 2.0:
        mod = om * om                                  # explicit square -> VALU only
    elif gamma == 1.0:
        mod = om
    else:
        mod = jnp.power(om, jnp.float32(gamma))        # general-gamma path (EUP)
    focal = mod * ce * w                               # per-class weight
    out_ref[...] = jnp.sum(focal, axis=1).astype(out_ref.dtype)   # reduce L -> (Bt, St)


def _select_tiles(B, L, S, itemsize, per_input_budget):
    """Pick (Bt, St) so one input tile's padded VMEM footprint ~<= budget."""
    lane = 128
    sub = max(8, 32 // itemsize)            # sublane granularity (f32: 8, bf16: 16)
    L_pad = _round_up(L, sub)
    S_lanes = _round_up(S, lane)

    row_bytes = L_pad * S_lanes * itemsize  # one batch row, full S, padded
    max_bt = max(1, per_input_budget // row_bytes)

    if B <= max_bt:
        Bt, St = B, S                       # whole problem fits in a single block
    elif max_bt >= 8:
        Bt, St = (max_bt // 8) * 8, S       # full-S rows, sublane-friendly batch tile
    else:
        # Even a handful of full-S rows exceeds the budget -> tile S instead.
        Bt = B if B < 8 else 8
        st_lanes = max(1, per_input_budget // (Bt * L_pad * lane * itemsize))
        St = min(S_lanes, st_lanes * lane)

    # v7x megacore: ensure >= 2 blocks along one "parallel" axis whenever the
    # problem is splittable (only a tiny extra step on single-TC v5e/v6e).
    if pl.cdiv(B, Bt) == 1 and pl.cdiv(S, St) == 1:
        if B >= 16:
            Bt = _round_up(pl.cdiv(B, 2), 8)
        elif S >= 2 * lane:
            St = _round_up(pl.cdiv(S, 2), lane)
    return Bt, St


def _vmem_bytes_estimate(Bt, St, L, in_itemsize):
    """Padded VMEM footprint: 2 inputs + output + weight, each double-buffered."""
    sub = max(8, 32 // in_itemsize)
    L_pad = _round_up(L, sub)
    St_pad = _round_up(St, 128)
    in_blk = Bt * L_pad * St_pad * in_itemsize
    out_blk = _round_up(Bt, 8) * St_pad * 4
    w_blk = _round_up(L, 8) * 128 * 4
    return 2 * (2 * in_blk) + 2 * out_blk + 2 * w_blk


def focal_loss(logits, labels, weight, *, gamma=GAMMA):
    """logits, labels: (B, L, S); weight: (1, L, 1) -> (B, S) float32.

    Inputs may be f32 or bf16 (bf16 halves HBM traffic; math stays f32).
    """
    B, L, S = logits.shape
    assert labels.shape == (B, L, S)
    assert weight.shape == (1, L, 1)
    itemsize = jnp.dtype(logits.dtype).itemsize

    # --- VMEM budgets (adapts to 128 MiB v5e/v6e vs 64 MiB v7x parts) --------
    try:
        vmem_cap = int(getattr(pltpu.get_tpu_info(), "vmem_capacity_bytes",
                               64 << 20))
    except Exception:
        vmem_cap = 64 << 20                       # conservative fallback (v7x)
    vmem_cap_budget = (vmem_cap * 3) // 4         # ~48 MiB on v7x, ~96 MiB v5e/v6e
    per_input_budget = min(4 << 20, max(1 << 20, vmem_cap_budget // 12))

    Bt, St = _select_tiles(B, L, S, itemsize, per_input_budget)
    grid = (pl.cdiv(B, Bt), pl.cdiv(S, St))

    est = _vmem_bytes_estimate(Bt, St, L, itemsize)
    vmem_limit = int(min(vmem_cap_budget, max(2 * est, 32 << 20)))

    kernel = functools.partial(_focal_loss_kernel, gamma=float(gamma))

    return pl.pallas_call(
        kernel,
        out_shape=jax.ShapeDtypeStruct((B, S), jnp.float32),
        grid_spec=pltpu.PrefetchScalarGridSpec(
            num_scalar_prefetch=0,
            grid=grid,
            in_specs=[
                pl.BlockSpec((Bt, L, St), lambda i, j: (i, 0, j)),
                pl.BlockSpec((Bt, L, St), lambda i, j: (i, 0, j)),
                pl.BlockSpec((1, L, 1), lambda i, j: (0, 0, 0)),  # tiny, re-fetched cheaply
            ],
            out_specs=pl.BlockSpec((Bt, St), lambda i, j: (i, j)),
        ),
        compiler_params=pltpu.CompilerParams(
            dimension_semantics=("parallel", "parallel"),
            vmem_limit_bytes=vmem_limit,
        ),
    )(logits, labels, weight)


def focal_loss_ref(logits, labels, weight, gamma=GAMMA):
    y = logits.astype(jnp.float32)
    t = labels.astype(jnp.float32)
    ce = -jnp.log(y + EPS) * t
    fl = jnp.power(1.0 - y, gamma) * ce * weight
    return jnp.sum(fl, axis=1)


def _make_inputs(key, B, L, S, dtype=jnp.float32):
    k1, k2 = jax.random.split(key)
    # logits act as probabilities (the module takes log directly on them).
    logits = jax.random.uniform(k1, (B, L, S), dtype=jnp.float32,
                                minval=0.01, maxval=0.99).astype(dtype)
    cls = jax.random.randint(k2, (B, S), 0, L)
    labels = jax.nn.one_hot(cls, L, dtype=jnp.float32).transpose(0, 2, 1).astype(dtype)
    return logits, labels


if __name__ == "__main__":
    # TODO(synk): self.weight is never defined in the reference module's __init__;
    # it is modeled deterministically as a per-class weight of shape (1, L, 1).

    # 1) Small shape implied by the forward: B=2 batch, L=4 classes, S=16 seq.
    B, L, S = 2, 4, 16
    logits, labels = _make_inputs(jax.random.PRNGKey(0), B, L, S)
    weight = (1.0 + 0.25 * jnp.arange(L, dtype=jnp.float32)).reshape(1, L, 1)
    out = jax.block_until_ready(focal_loss(logits, labels, weight))
    ref = focal_loss_ref(logits, labels, weight)
    np.testing.assert_allclose(np.asarray(out), np.asarray(ref), rtol=1e-5, atol=1e-5)

    # 2) Non-tile-aligned batch + multi-block S: exercises the ragged last S
    #    block (no host-side padding) and the >=2-step parallel grid.
    B2, L2, S2 = 9, 4, 384
    logits2, labels2 = _make_inputs(jax.random.PRNGKey(1), B2, L2, S2)
    weight2 = (1.0 + 0.25 * jnp.arange(L2, dtype=jnp.float32)).reshape(1, L2, 1)
    out2 = jax.block_until_ready(focal_loss(logits2, labels2, weight2))
    ref2 = focal_loss_ref(logits2, labels2, weight2)
    np.testing.assert_allclose(np.asarray(out2), np.asarray(ref2), rtol=1e-5, atol=1e-5)

    # 3) bf16-streamed inputs (half the HBM bytes); math and output stay f32.
    B3, L3, S3 = 8, 4, 256
    logits3, labels3 = _make_inputs(jax.random.PRNGKey(2), B3, L3, S3,
                                    dtype=jnp.bfloat16)
    weight3 = (1.0 + 0.25 * jnp.arange(L3, dtype=jnp.float32)).reshape(1, L3, 1)
    out3 = jax.block_until_ready(focal_loss(logits3, labels3, weight3))
    ref3 = focal_loss_ref(logits3, labels3, weight3)
    np.testing.assert_allclose(np.asarray(out3), np.asarray(ref3), rtol=2e-5, atol=2e-5)

    print("KERNEL_OK")
</pallas_src>

<mosaic_0001>
module attributes {stable_mosaic.version = 11 : i64} {
  func.func @_focal_loss_kernel(%arg0: i32, %arg1: i32, %arg2: memref<2x4x16xf32, #tpu.memory_space<vmem>>, %arg3: memref<2x4x16xf32, #tpu.memory_space<vmem>>, %arg4: memref<1x4x1xf32, #tpu.memory_space<vmem>>, %arg5: memref<2x16xf32, #tpu.memory_space<vmem>>) attributes {dimension_semantics = [#tpu.dimension_semantics<parallel>, #tpu.dimension_semantics<parallel>], iteration_bounds = array<i64: 1, 1>, scalar_prefetch = 0 : i64, scratch_operands = 0 : i64, tpu.core_type = #tpu.core_type<tc>, window_params = [{transform_indices = @transform_0, window_bounds = array<i64: 2, 4, 16>}, {transform_indices = @transform_1, window_bounds = array<i64: 2, 4, 16>}, {pipeline_mode = #tpu.pipeline_mode<synchronous>, transform_indices = @transform_2, window_bounds = array<i64: 1, 4, 1>}, {transform_indices = @transform_3, window_bounds = array<i64: 2, 16>}]} {
    %c0 = arith.constant 0 : index
    %c0_0 = arith.constant 0 : index
    %c0_1 = arith.constant 0 : index
    %0 = vector.load %arg2[%c0, %c0_0, %c0_1] : memref<2x4x16xf32, #tpu.memory_space<vmem>>, vector<2x4x16xf32>
    %c0_2 = arith.constant 0 : index
    %c0_3 = arith.constant 0 : index
    %c0_4 = arith.constant 0 : index
    %1 = vector.load %arg3[%c0_2, %c0_3, %c0_4] : memref<2x4x16xf32, #tpu.memory_space<vmem>>, vector<2x4x16xf32>
    %c0_5 = arith.constant 0 : index
    %c0_6 = arith.constant 0 : index
    %c0_7 = arith.constant 0 : index
    %2 = vector.load %arg4[%c0_5, %c0_6, %c0_7] : memref<1x4x1xf32, #tpu.memory_space<vmem>>, vector<1x4x1xf32>
    %cst = arith.constant 9.99999997E-7 : f32
    %3 = vector.broadcast %cst : f32 to vector<2x4x16xf32>
    %4 = arith.addf %0, %3 : vector<2x4x16xf32>
    %5 = math.log %4 : vector<2x4x16xf32>
    %cst_8 = arith.constant 0.000000e+00 : f32
    %6 = vector.broadcast %cst_8 : f32 to vector<2x4x16xf32>
    %7 = arith.subf %6, %5 : vector<2x4x16xf32>
    %8 = arith.mulf %7, %1 : vector<2x4x16xf32>
    %cst_9 = arith.constant 1.000000e+00 : f32
    %9 = vector.broadcast %cst_9 : f32 to vector<2x4x16xf32>
    %10 = arith.subf %9, %0 : vector<2x4x16xf32>
    %11 = arith.mulf %10, %10 : vector<2x4x16xf32>
    %12 = arith.mulf %11, %8 : vector<2x4x16xf32>
    %13 = vector.broadcast %2 : vector<1x4x1xf32> to vector<2x4x16xf32>
    %14 = arith.mulf %12, %13 : vector<2x4x16xf32>
    %cst_10 = arith.constant dense<0.000000e+00> : vector<2x16xf32>
    %15 = vector.multi_reduction <add>, %14, %cst_10 [1] : vector<2x4x16xf32> to vector<2x16xf32>
    %c0_11 = arith.constant 0 : index
    %c0_12 = arith.constant 0 : index
    %16 = vector.load %arg5[%c0_11, %c0_12] : memref<2x16xf32, #tpu.memory_space<vmem>>, vector<2x16xf32>
    tpu.vector_store %arg5[%c0_11, %c0_12], %15 {strides = array<i32>} : memref<2x16xf32, #tpu.memory_space<vmem>>, vector<2x16xf32>,
    return
  }
  func.func @transform_0(%arg0: i32, %arg1: i32) -> (i32, i32, i32) {
    %c0_i32 = arith.constant 0 : i32
    %c0_i32_0 = arith.constant 0 : i32
    return %arg0, %c0_i32, %arg1 : i32, i32, i32
  }
  func.func @transform_1(%arg0: i32, %arg1: i32) -> (i32, i32, i32) {
    %c0_i32 = arith.constant 0 : i32
    %c0_i32_0 = arith.constant 0 : i32
    return %arg0, %c0_i32, %arg1 : i32, i32, i32
  }
  func.func @transform_2(%arg0: i32, %arg1: i32) -> (i32, i32, i32) {
    %c0_i32 = arith.constant 0 : i32
    %c0_i32_0 = arith.constant 0 : i32
    %c0_i32_1 = arith.constant 0 : i32
    %c0_i32_2 = arith.constant 0 : i32
    return %c0_i32, %c0_i32_0, %c0_i32_1 : i32, i32, i32
  }
  func.func @transform_3(%arg0: i32, %arg1: i32) -> (i32, i32) {
    %c0_i32 = arith.constant 0 : i32
    return %arg0, %arg1 : i32, i32
  }
}

</mosaic_0001>

<llo_original>
// kernel: tpu_custom_call.1
$region0: #{tpu_custom_call.1}
  #allocation0 [shape = 'u32[]', space=smem, size = 0x4, offset = 0x4, fixed_abs, tag = 'smem constant byte address 0x4 - core index']
  #allocation1 [shape = 'u32[144,128]{1,0:T(1,128)}', space=vmem, size = 0x12000, scoped, tag = 'internal scratch']
  %s0 = inlined_call_operand.hbm [shape: f32[2,4,16], index: 0, kind: input, shape index: {}]
  %s1 = inlined_call_operand.vmem [shape: f32[2,4,16], index: 1, kind: input, shape index: {}]
  %s2 = inlined_call_operand.vmem [shape: f32[1,4,1], index: 2, kind: input, shape index: {}]
  %s3 = inlined_call_operand.hbm [shape: f32[2,16], index: 3, kind: output, shape index: {}]
  %s4 = sld [smem:[#allocation0]]
  $region26: #{tpu_custom_call.1} parent=0
    _
  %s6 = ssub.s32 1, %s4
  %s7 = scalar_select 0, %s6, %s4
  $region1: #{tpu_custom_call.1} parent=0
    #allocation2 [shape = 'u8[4096]{0}', space=vmem, size = 0x1000, scoped, tag = 'input window, operand 0, single buffered']
    #allocation3 [shape = 's32[1]{0}', space=sflag, size = 0x4, scoped, tag = 'scoped memory for tpu_custom_call.1']
    #allocation4 [shape = 's32[1]{0}', space=sflag, size = 0x4, scoped, tag = 'scoped memory for tpu_custom_call.1']
    #allocation5 [shape = 'u8[1024]{0}', space=vmem, size = 0x400, scoped, tag = 'output window, operand 0, single buffered']
    %8 = vsyncpa [#allocation3], 0
    %9 = vsyncpa [#allocation4], 0
    // Predicated region
    $region2: #{tpu_custom_call.1} parent=1 // pred_check
      _
    $region3: #{tpu_custom_call.1} parent=1 // pred_check_branch
      %11 = sbr.rel (0) target = $region5
    $region4: #{tpu_custom_call.1} parent=1 // pred_region
      %s13 = ssub.s32 128, 128
      %14 = vsyncadd [#allocation3], %s13
      %s15 = sshll.u32 [#allocation2], 4
      %s16 = int_to_ptr.vmem [resolvable:$true] %s15
      %21 = dma.hbm_to_vmem [thread:$0]  %s0, 128, %s16, [#allocation3], 64, 64, 4
    $region5: #{tpu_custom_call.1} parent=1 // pred_fallthru
      _
    // Predicated region
    $region6: #{tpu_custom_call.1} parent=1 // pred_check
      _
    $region7: #{tpu_custom_call.1} parent=1 // pred_check_branch
      %23 = sbr.rel (0) target = $region9
    $region8: #{tpu_custom_call.1} parent=1 // pred_region
      _
    $region9: #{tpu_custom_call.1} parent=1 // pred_fallthru
      _
    // Predicated region
    $region10: #{tpu_custom_call.1} parent=1 // pred_check
      _
    $region11: #{tpu_custom_call.1} parent=1 // pred_check_branch
      %25 = sbr.rel (0) target = $region13
    $region12: #{tpu_custom_call.1} parent=1 // pred_region
      _
    $region13: #{tpu_custom_call.1} parent=1 // pred_fallthru
      _
    // Predicated region
    $region14: #{tpu_custom_call.1} parent=1 // pred_check
      _
    $region15: #{tpu_custom_call.1} parent=1 // pred_check_branch
      %27 = sbr.rel (0) target = $region17
    $region16: #{tpu_custom_call.1} parent=1 // pred_region
      %28 = dma.done [#allocation3], 128
    $region17: #{tpu_custom_call.1} parent=1 // pred_fallthru
      _
    %v29 = vld [vmem:[#allocation2] sm:$0xf]
    %v30 = vld [vmem:[#allocation2 + $0x4] sm:$0xf]
    %v31 = vld [vmem:[%s1] sm:$0xf]
    %v32 = vld [vmem:[%s1 + $0x4] sm:$0xf]
    %v33 = vld [vmem:[%s2] sm:$0xf]
    %v34 = vadd.f32 %v29, 1e-06
    %v35 = vadd.f32 %v30, 1e-06
    %v36 = vlog2.pop %v34
    %v37 = vmul.f32 %v36, 0.6931472
    %v38 = vlog2.pop %v35
    %v39 = vmul.f32 %v38, 0.6931472
    %v40 = vsub.f32 0.0, %v37
    %v41 = vsub.f32 0.0, %v39
    %v42 = vmul.f32 %v40, %v31
    %v43 = vmul.f32 %v41, %v32
    %v44 = vsub.f32 1.0, %v29
    %v45 = vsub.f32 1.0, %v30
    %v46 = vmul.f32 %v44, %v44
    %v47 = vmul.f32 %v45, %v45
    %v48 = vmul.f32 %v46, %v42
    %v49 = vmul.f32 %v47, %v43
    %51 = vset.pattern.permute.xlu0 0
    %52 = vperm.xlu0 %51, %v33
    %v53 = vpop.permute.xlu0 %52
    %v55 = vmul.f32 %v48, %v53
    %v56 = vmul.f32 %v49, %v53
    %vm57 = vcmask 125952
    %v58 = vsel %vm57, %v55, 0.0
    %v59 = vrot.slane %v58, 4
    %v60 = vadd.f32 %v58, %v59
    %v61 = vrot.slane %v60, 2
    %v62 = vadd.f32 %v60, %v61
    %v63 = vrot.slane %v62, 1
    %v64 = vadd.f32 %v62, %v63
    %v65 = vsel %vm57, %v56, 0.0
    %v66 = vrot.slane %v65, 4
    %v67 = vadd.f32 %v65, %v66
    %v68 = vrot.slane %v67, 2
    %v69 = vadd.f32 %v67, %v68
    %v70 = vrot.slane %v69, 1
    %v71 = vadd.f32 %v69, %v70
    %vm74 = vcmask 1041409
    %v75 = vsel %vm74, %v71, %v64
    %vm77 = vcmask 123904
    %78 = vst.msk [vmem:[#allocation5] sm:$0x3] %vm77, %v75
    // Predicated region
    $region18: #{tpu_custom_call.1} parent=1 // pred_check
      _
    $region19: #{tpu_custom_call.1} parent=1 // pred_check_branch
      %80 = sbr.rel (0) target = $region21
    $region20: #{tpu_custom_call.1} parent=1 // pred_region
      %s82 = ssub.s32 32, 32
      %83 = vsyncadd [#allocation4], %s82
      %s85 = sshll.u32 [#allocation5], 4
      %s86 = int_to_ptr.vmem [resolvable:$true] %s85
      %88 = dma.vmem_to_hbm [thread:$0]  %s86, 32, %s3, [#allocation4]
    $region21: #{tpu_custom_call.1} parent=1 // pred_fallthru
      _
    // Predicated region
    $region22: #{tpu_custom_call.1} parent=1 // pred_check
      _
    $region23: #{tpu_custom_call.1} parent=1 // pred_check_branch
      %90 = sbr.rel (0) target = $region25
    $region24: #{tpu_custom_call.1} parent=1 // pred_region
      %91 = dma.done [#allocation4], 32
    $region25: #{tpu_custom_call.1} parent=1 // pred_fallthru
      _
    %92 = vsyncpa [#allocation3], 1
    %93 = vsyncpa [#allocation4], 1

</llo_original>
